<compile_context>
chip_gen: v6e
topology: v6e:2x2x1
jax: 0.10.0
libtpu: 0.0.40
codegen_flags: <defaults>
</compile_context>

<pallas_src>
import jax
import jax.numpy as jnp
import numpy as np
from jax.experimental import pallas as pl
from jax.experimental.pallas import tpu as pltpu

EPS = 1e-5
LANE = 128      # TPU lane width  (last dim)
SUBLANE = 8     # TPU sublane width (second-to-last dim)

_VMEM = pl.BlockSpec(memory_space=pltpu.MemorySpace.VMEM)


def _rup(n, m):
    return ((n + m - 1) // m) * m


# ----------------------------- fused Pallas kernel ---------------------------

def make_fused_mlp_kernel(layout):
    """The whole network is unrolled at trace time from the static `layout`
    (which stacked-weight slice / bias-table row each layer reads)."""
    H = layout["H"]
    blocks = layout["blocks"]
    has_wide = layout["n_wide"] > 0

    def kernel(*refs):
        if has_wide:
            x_ref, wfirst_ref, wsq_ref, wwide_ref, b_ref, o_ref = refs
        else:
            x_ref, wfirst_ref, wsq_ref, b_ref, o_ref = refs
            wwide_ref = None

        def bias(i):                       # (1, H) f32 row, broadcasts over batch
            return b_ref[pl.ds(i, 1), :]

        def dot_bf16(a_f32, w_bf16):       # bf16 MXU feed, f32 accumulation
            return jnp.dot(a_f32.astype(jnp.bfloat16), w_bf16,
                           preferred_element_type=jnp.float32)

        # feature_extractor: ReLU(BN-folded Linear); Dropout = eval identity
        h = jnp.maximum(dot_bf16(x_ref[...], wfirst_ref[...])
                        + bias(layout["feat_b"]), 0.0)

        # residual blocks
        for e in blocks:
            if e["proj"]:
                # one MXU pass against [w1 | ws] (H, 2H), then split
                both = dot_bf16(h, wwide_ref[e["wide_idx"]])
                t = jnp.maximum(both[:, :H] + bias(e["b1_idx"]), 0.0)
                res = both[:, H:] + bias(e["bs_idx"])
            else:
                res = h                    # nn.Identity shortcut: free
                t = jnp.maximum(dot_bf16(h, wsq_ref[e["w1_idx"]])
                                + bias(e["b1_idx"]), 0.0)
            t = dot_bf16(t, wsq_ref[e["w2_idx"]]) + bias(e["b2_idx"])
            h = jnp.maximum(t + res, 0.0)

        # classifier
        o_ref[...] = (dot_bf16(h, wsq_ref[layout["cls_w"]])
                      + bias(layout["cls_b"])).astype(o_ref.dtype)

    return kernel


# --------------------------- parameter construction --------------------------

def init_params(key, input_size, hidden_sizes, num_classes):
    """Deterministic synthetic parameters matching the PyTorch module shapes
    (Linear weights stored pre-transposed as (in_features, out_features))."""

    def linear(key, fin, fout):
        kw, kb = jax.random.split(key)
        bound = 1.0 / np.sqrt(fin)
        w = jax.random.uniform(kw, (fin, fout), jnp.float32, -bound, bound)
        b = jax.random.uniform(kb, (fout,), jnp.float32, -bound, bound)
        return w, b

    def bn(key, n):
        k1, k2, k3, k4 = jax.random.split(key, 4)
        return dict(
            gamma=1.0 + 0.1 * jax.random.normal(k1, (n,), jnp.float32),
            beta=0.1 * jax.random.normal(k2, (n,), jnp.float32),
            mean=0.1 * jax.random.normal(k3, (n,), jnp.float32),
            var=0.5 + jnp.abs(jax.random.normal(k4, (n,), jnp.float32)),
        )

    keys = iter(jax.random.split(key, 64))
    params = {}

    w, b = linear(next(keys), input_size, hidden_sizes[0])
    params["feat"] = {"w": w, "b": b, "bn": bn(next(keys), hidden_sizes[0])}

    params["blocks"] = []
    for i in range(len(hidden_sizes) - 1):
        fin, fout = hidden_sizes[i], hidden_sizes[i + 1]
        w1, b1 = linear(next(keys), fin, fout)
        bn1 = bn(next(keys), fout)
        w2, b2 = linear(next(keys), fout, fout)
        bn2 = bn(next(keys), fout)
        blk = {"w1": w1, "b1": b1, "bn1": bn1,
               "w2": w2, "b2": b2, "bn2": bn2,
               "has_proj": fin != fout}
        if fin != fout:
            ws, bs = linear(next(keys), fin, fout)
            blk["ws"], blk["bs"] = ws, bs
        params["blocks"].append(blk)

    w, b = linear(next(keys), hidden_sizes[-1], num_classes)
    params["cls"] = {"w": w, "b": b}
    return params


def _fold_bn(w, b, gamma, beta, mean, var):
    """Fold inference-mode BatchNorm1d into the preceding Linear (in f32)."""
    scale = gamma / jnp.sqrt(var + EPS)
    w_f = w * scale[None, :]
    b_f = b * scale + (beta - mean * scale)
    return w_f, b_f


def pack_params(params, input_size, hidden_sizes, num_classes):
    """One-time precompute: fold BN (f32), zero-pad feature dims to the lane
    width, stack everything into a handful of bf16/f32 operands + a static
    layout describing which slice each layer reads."""
    kp = _rup(input_size, LANE)
    h_pad = [_rup(h, LANE) for h in hidden_sizes]
    c_pad = _rup(num_classes, LANE)
    H = max(h_pad + [c_pad])          # common padded hidden width

    def pad_sq(w):
        return jnp.zeros((H, H), jnp.float32).at[:w.shape[0], :w.shape[1]].set(w)

    def pad_b(b):
        return jnp.zeros((H,), jnp.float32).at[:b.shape[0]].set(b)

    sq, wide, biases = [], [], []
    layout = {"H": H, "kp": kp, "blocks": []}

    # feature extractor
    f = params["feat"]
    w0, b0 = _fold_bn(f["w"], f["b"], **f["bn"])
    w_first = jnp.zeros((kp, H), jnp.float32).at[
        :input_size, :hidden_sizes[0]].set(w0)
    layout["feat_b"] = len(biases); biases.append(pad_b(b0))

    # residual blocks
    for blk in params["blocks"]:
        w1, b1 = _fold_bn(blk["w1"], blk["b1"], **blk["bn1"])
        w2, b2 = _fold_bn(blk["w2"], blk["b2"], **blk["bn2"])
        e = {"proj": blk["has_proj"]}
        if blk["has_proj"]:
            # pre-concatenate [w1 | ws] along the output (lane) dim
            wcat = jnp.zeros((H, 2 * H), jnp.float32)
            wcat = wcat.at[:w1.shape[0], :w1.shape[1]].set(w1)
            wcat = wcat.at[:blk["ws"].shape[0],
                           H:H + blk["ws"].shape[1]].set(blk["ws"])
            e["wide_idx"] = len(wide); wide.append(wcat)
            e["b1_idx"] = len(biases); biases.append(pad_b(b1))
            e["bs_idx"] = len(biases); biases.append(pad_b(blk["bs"]))
        else:
            e["w1_idx"] = len(sq); sq.append(pad_sq(w1))
            e["b1_idx"] = len(biases); biases.append(pad_b(b1))
        e["w2_idx"] = len(sq); sq.append(pad_sq(w2))
        e["b2_idx"] = len(biases); biases.append(pad_b(b2))
        layout["blocks"].append(e)

    # classifier
    c = params["cls"]
    layout["cls_w"] = len(sq); sq.append(pad_sq(c["w"]))
    layout["cls_b"] = len(biases); biases.append(pad_b(c["b"]))

    layout["n_wide"] = len(wide)

    # BN fold was done in f32 above; cast weights to bf16 last.
    w_first = w_first.astype(jnp.bfloat16)
    w_sq = jnp.stack(sq).astype(jnp.bfloat16)
    w_wide = jnp.stack(wide).astype(jnp.bfloat16) if wide else None

    nb = _rup(len(biases), SUBLANE)
    b_stack = jnp.zeros((nb, H), jnp.float32).at[:len(biases)].set(
        jnp.stack(biases))

    return {"w_first": w_first, "w_sq": w_sq, "w_wide": w_wide,
            "b_stack": b_stack, "layout": layout}


# ---------------------------------- forward -----------------------------------

def advanced_mlp_forward(packed, x, num_classes):
    layout = packed["layout"]
    kp, H = layout["kp"], layout["H"]

    B = x.shape[0]
    x2 = x.reshape(B, -1).astype(jnp.float32)        # x.view(x.size(0), -1)
    bp = _rup(B, SUBLANE)
    x_pad = jnp.zeros((bp, kp), jnp.float32).at[:B, :x2.shape[1]].set(x2)
    # TODO(synk): when batch/hidden sizes scale up, replace this gridless call
    # (and the wrapper pad) with a batch-tiled grid +
    # dimension_semantics=("parallel",) so both v7x TensorCores get work and
    # per-layer weights can stream with double-buffering under the 64 MiB VMEM.

    operands = [x_pad, packed["w_first"], packed["w_sq"]]
    if packed["w_wide"] is not None:
        operands.append(packed["w_wide"])
    operands.append(packed["b_stack"])

    out = pl.pallas_call(
        make_fused_mlp_kernel(layout),
        out_shape=jax.ShapeDtypeStruct((bp, H), jnp.float32),
        in_specs=[_VMEM] * len(operands),
        out_specs=_VMEM,
    )(*operands)

    return out[:B, :num_classes]


def advanced_mlp_reference(params, x):
    """Pure-JAX reference (un-folded BN, eval mode, f32) for correctness."""
    x = x.reshape(x.shape[0], -1).astype(jnp.float32)

    def bn_apply(h, bn):
        return (h - bn["mean"]) / jnp.sqrt(bn["var"] + EPS) * bn["gamma"] + bn["beta"]

    f = params["feat"]
    h = jnp.maximum(bn_apply(x @ f["w"] + f["b"], f["bn"]), 0.0)
    for blk in params["blocks"]:
        res = (h @ blk["ws"] + blk["bs"]) if blk["has_proj"] else h
        t = jnp.maximum(bn_apply(h @ blk["w1"] + blk["b1"], blk["bn1"]), 0.0)
        t = bn_apply(t @ blk["w2"] + blk["b2"], blk["bn2"])   # FIX: t @ w2
        h = jnp.maximum(t + res, 0.0)
    c = params["cls"]
    return h @ c["w"] + c["b"]


# ----------------------------------- main --------------------------------------

if __name__ == "__main__":
    key = jax.random.PRNGKey(0)
    k_x, k_p = jax.random.split(key)

    # X is (N, H, W) in the training script; input_size = H * W after flatten.
    batch, Hsp, Wsp = 8, 16, 16
    input_size = Hsp * Wsp
    hidden_sizes = [64, 32, 32]    # exercises both projection & identity shortcuts
    num_classes = 4

    x = jax.random.normal(k_x, (batch, Hsp, Wsp), jnp.float32)
    params = init_params(k_p, input_size, hidden_sizes, num_classes)
    packed = pack_params(params, input_size, hidden_sizes, num_classes)

    out = advanced_mlp_forward(packed, x, num_classes)
    out = jax.block_until_ready(out)

    ref = advanced_mlp_reference(params, x)
    # bf16 weights / bf16 MXU feed (f32 accumulation) -> loosened tolerance
    # versus the full-f32 reference, per the perf-review correctness note.
    np.testing.assert_allclose(np.asarray(out), np.asarray(ref),
                               rtol=5e-2, atol=5e-2)

    print("KERNEL_OK")
</pallas_src>

<mosaic_0001>
module attributes {stable_mosaic.version = 11 : i64} {
  func.func @kernel(%arg0: memref<8x256xf32, #tpu.memory_space<vmem>>, %arg1: memref<256x128xbf16, #tpu.memory_space<vmem>>, %arg2: memref<4x128x128xbf16, #tpu.memory_space<vmem>>, %arg3: memref<1x128x256xbf16, #tpu.memory_space<vmem>>, %arg4: memref<8x128xf32, #tpu.memory_space<vmem>>, %arg5: memref<8x128xf32, #tpu.memory_space<vmem>>) attributes {dimension_semantics = [], scalar_prefetch = 0 : i64, scratch_operands = 0 : i64, tpu.core_type = #tpu.core_type<tc>} {
    %c0 = arith.constant 0 : index
    %c0_0 = arith.constant 0 : index
    %0 = vector.load %arg0[%c0, %c0_0] : memref<8x256xf32, #tpu.memory_space<vmem>>, vector<8x256xf32>
    %c0_1 = arith.constant 0 : index
    %c0_2 = arith.constant 0 : index
    %1 = vector.load %arg1[%c0_1, %c0_2] : memref<256x128xbf16, #tpu.memory_space<vmem>>, vector<256x128xbf16>
    %2 = arith.truncf %0 : vector<8x256xf32> to vector<8x256xbf16>
    %cst = arith.constant dense<0.000000e+00> : vector<8x128xf32>
    %3 = tpu.matmul %2, %1, %cst {dimension_numbers = #tpu.dot_dimension_numbers<[1], [0], [0], [1], [0, 0, 1, 1], [], []>} : vector<8x256xbf16>, vector<256x128xbf16>, vector<8x128xf32> -> vector<8x128xf32>
    %c0_3 = arith.constant 0 : index
    %c0_4 = arith.constant 0 : index
    %4 = vector.load %arg4[%c0_3, %c0_4] : memref<8x128xf32, #tpu.memory_space<vmem>>, vector<1x128xf32>
    %5 = vector.broadcast %4 : vector<1x128xf32> to vector<8x128xf32>
    %6 = arith.addf %3, %5 : vector<8x128xf32>
    %cst_5 = arith.constant 0.000000e+00 : f32
    %7 = vector.broadcast %cst_5 : f32 to vector<8x128xf32>
    %8 = arith.maximumf %6, %7 : vector<8x128xf32>
    %c0_6 = arith.constant 0 : index
    %c0_7 = arith.constant 0 : index
    %c0_8 = arith.constant 0 : index
    %9 = vector.load %arg3[%c0_6, %c0_7, %c0_8] : memref<1x128x256xbf16, #tpu.memory_space<vmem>>, vector<1x128x256xbf16>
    %10 = vector.shape_cast %9 : vector<1x128x256xbf16> to vector<128x256xbf16>
    %11 = arith.truncf %8 : vector<8x128xf32> to vector<8x128xbf16>
    %cst_9 = arith.constant dense<0.000000e+00> : vector<8x256xf32>
    %12 = tpu.matmul %11, %10, %cst_9 {dimension_numbers = #tpu.dot_dimension_numbers<[1], [0], [0], [1], [0, 0, 1, 1], [], []>} : vector<8x128xbf16>, vector<128x256xbf16>, vector<8x256xf32> -> vector<8x256xf32>
    %13 = vector.extract_strided_slice %12 {offsets = [0, 0], sizes = [8, 128], strides = [1, 1]} : vector<8x256xf32> to vector<8x128xf32>
    %c1 = arith.constant 1 : index
    %c0_10 = arith.constant 0 : index
    %14 = vector.load %arg4[%c1, %c0_10] : memref<8x128xf32, #tpu.memory_space<vmem>>, vector<1x128xf32>
    %15 = vector.broadcast %14 : vector<1x128xf32> to vector<8x128xf32>
    %16 = arith.addf %13, %15 : vector<8x128xf32>
    %cst_11 = arith.constant 0.000000e+00 : f32
    %17 = vector.broadcast %cst_11 : f32 to vector<8x128xf32>
    %18 = arith.maximumf %16, %17 : vector<8x128xf32>
    %19 = vector.extract_strided_slice %12 {offsets = [0, 128], sizes = [8, 128], strides = [1, 1]} : vector<8x256xf32> to vector<8x128xf32>
    %c2 = arith.constant 2 : index
    %c0_12 = arith.constant 0 : index
    %20 = vector.load %arg4[%c2, %c0_12] : memref<8x128xf32, #tpu.memory_space<vmem>>, vector<1x128xf32>
    %21 = vector.broadcast %20 : vector<1x128xf32> to vector<8x128xf32>
    %22 = arith.addf %19, %21 : vector<8x128xf32>
    %c0_13 = arith.constant 0 : index
    %c0_14 = arith.constant 0 : index
    %c0_15 = arith.constant 0 : index
    %23 = vector.load %arg2[%c0_13, %c0_14, %c0_15] : memref<4x128x128xbf16, #tpu.memory_space<vmem>>, vector<1x128x128xbf16>
    %24 = vector.shape_cast %23 : vector<1x128x128xbf16> to vector<128x128xbf16>
    %25 = arith.truncf %18 : vector<8x128xf32> to vector<8x128xbf16>
    %cst_16 = arith.constant dense<0.000000e+00> : vector<8x128xf32>
    %26 = tpu.matmul %25, %24, %cst_16 {dimension_numbers = #tpu.dot_dimension_numbers<[1], [0], [0], [1], [0, 0, 1, 1], [], []>} : vector<8x128xbf16>, vector<128x128xbf16>, vector<8x128xf32> -> vector<8x128xf32>
    %c3 = arith.constant 3 : index
    %c0_17 = arith.constant 0 : index
    %27 = vector.load %arg4[%c3, %c0_17] : memref<8x128xf32, #tpu.memory_space<vmem>>, vector<1x128xf32>
    %28 = vector.broadcast %27 : vector<1x128xf32> to vector<8x128xf32>
    %29 = arith.addf %26, %28 : vector<8x128xf32>
    %30 = arith.addf %29, %22 : vector<8x128xf32>
    %cst_18 = arith.constant 0.000000e+00 : f32
    %31 = vector.broadcast %cst_18 : f32 to vector<8x128xf32>
    %32 = arith.maximumf %30, %31 : vector<8x128xf32>
    %c1_19 = arith.constant 1 : index
    %c0_20 = arith.constant 0 : index
    %c0_21 = arith.constant 0 : index
    %33 = vector.load %arg2[%c1_19, %c0_20, %c0_21] : memref<4x128x128xbf16, #tpu.memory_space<vmem>>, vector<1x128x128xbf16>
    %34 = vector.shape_cast %33 : vector<1x128x128xbf16> to vector<128x128xbf16>
    %35 = arith.truncf %32 : vector<8x128xf32> to vector<8x128xbf16>
    %cst_22 = arith.constant dense<0.000000e+00> : vector<8x128xf32>
    %36 = tpu.matmul %35, %34, %cst_22 {dimension_numbers = #tpu.dot_dimension_numbers<[1], [0], [0], [1], [0, 0, 1, 1], [], []>} : vector<8x128xbf16>, vector<128x128xbf16>, vector<8x128xf32> -> vector<8x128xf32>
    %c4 = arith.constant 4 : index
    %c0_23 = arith.constant 0 : index
    %37 = vector.load %arg4[%c4, %c0_23] : memref<8x128xf32, #tpu.memory_space<vmem>>, vector<1x128xf32>
    %38 = vector.broadcast %37 : vector<1x128xf32> to vector<8x128xf32>
    %39 = arith.addf %36, %38 : vector<8x128xf32>
    %cst_24 = arith.constant 0.000000e+00 : f32
    %40 = vector.broadcast %cst_24 : f32 to vector<8x128xf32>
    %41 = arith.maximumf %39, %40 : vector<8x128xf32>
    %c2_25 = arith.constant 2 : index
    %c0_26 = arith.constant 0 : index
    %c0_27 = arith.constant 0 : index
    %42 = vector.load %arg2[%c2_25, %c0_26, %c0_27] : memref<4x128x128xbf16, #tpu.memory_space<vmem>>, vector<1x128x128xbf16>
    %43 = vector.shape_cast %42 : vector<1x128x128xbf16> to vector<128x128xbf16>
    %44 = arith.truncf %41 : vector<8x128xf32> to vector<8x128xbf16>
    %cst_28 = arith.constant dense<0.000000e+00> : vector<8x128xf32>
    %45 = tpu.matmul %44, %43, %cst_28 {dimension_numbers = #tpu.dot_dimension_numbers<[1], [0], [0], [1], [0, 0, 1, 1], [], []>} : vector<8x128xbf16>, vector<128x128xbf16>, vector<8x128xf32> -> vector<8x128xf32>
    %c5 = arith.constant 5 : index
    %c0_29 = arith.constant 0 : index
    %46 = vector.load %arg4[%c5, %c0_29] : memref<8x128xf32, #tpu.memory_space<vmem>>, vector<1x128xf32>
    %47 = vector.broadcast %46 : vector<1x128xf32> to vector<8x128xf32>
    %48 = arith.addf %45, %47 : vector<8x128xf32>
    %49 = arith.addf %48, %32 : vector<8x128xf32>
    %cst_30 = arith.constant 0.000000e+00 : f32
    %50 = vector.broadcast %cst_30 : f32 to vector<8x128xf32>
    %51 = arith.maximumf %49, %50 : vector<8x128xf32>
    %c3_31 = arith.constant 3 : index
    %c0_32 = arith.constant 0 : index
    %c0_33 = arith.constant 0 : index
    %52 = vector.load %arg2[%c3_31, %c0_32, %c0_33] : memref<4x128x128xbf16, #tpu.memory_space<vmem>>, vector<1x128x128xbf16>
    %53 = vector.shape_cast %52 : vector<1x128x128xbf16> to vector<128x128xbf16>
    %54 = arith.truncf %51 : vector<8x128xf32> to vector<8x128xbf16>
    %cst_34 = arith.constant dense<0.000000e+00> : vector<8x128xf32>
    %55 = tpu.matmul %54, %53, %cst_34 {dimension_numbers = #tpu.dot_dimension_numbers<[1], [0], [0], [1], [0, 0, 1, 1], [], []>} : vector<8x128xbf16>, vector<128x128xbf16>, vector<8x128xf32> -> vector<8x128xf32>
    %c6 = arith.constant 6 : index
    %c0_35 = arith.constant 0 : index
    %56 = vector.load %arg4[%c6, %c0_35] : memref<8x128xf32, #tpu.memory_space<vmem>>, vector<1x128xf32>
    %57 = vector.broadcast %56 : vector<1x128xf32> to vector<8x128xf32>
    %58 = arith.addf %55, %57 : vector<8x128xf32>
    %c0_36 = arith.constant 0 : index
    %c0_37 = arith.constant 0 : index
    %59 = vector.load %arg5[%c0_36, %c0_37] : memref<8x128xf32, #tpu.memory_space<vmem>>, vector<8x128xf32>
    tpu.vector_store %arg5[%c0_36, %c0_37], %58 {strides = array<i32>} : memref<8x128xf32, #tpu.memory_space<vmem>>, vector<8x128xf32>,
    return
  }
}

</mosaic_0001>

<llo_original>
// kernel: tpu_custom_call.1
$region0: #{tpu_custom_call.1}
  #allocation0 [shape = 'u32[]', space=smem, size = 0x4, offset = 0x4, fixed_abs, tag = 'smem constant byte address 0x4 - core index']
  #allocation1 [shape = 'u32[144,128]{1,0:T(1,128)}', space=vmem, size = 0x12000, scoped, tag = 'internal scratch']
  %s0 = inlined_call_operand.hbm [shape: f32[8,256], index: 0, kind: input, shape index: {}]
  %s1 = inlined_call_operand.hbm [shape: bf16[256,128], index: 1, kind: input, shape index: {}]
  %s2 = inlined_call_operand.hbm [shape: bf16[4,128,128], index: 2, kind: input, shape index: {}]
  %s3 = inlined_call_operand.hbm [shape: bf16[1,128,256], index: 3, kind: input, shape index: {}]
  %s4 = inlined_call_operand.hbm [shape: f32[8,128], index: 4, kind: input, shape index: {}]
  %s5 = inlined_call_operand.hbm [shape: f32[8,128], index: 5, kind: output, shape index: {}]
  %s6 = sld [smem:[#allocation0]]
  $region50: #{tpu_custom_call.1} parent=0
    _
  %s8 = ssub.s32 1, %s6
  %s9 = scalar_select 0, %s8, %s6
  $region1: #{tpu_custom_call.1} parent=0
    #allocation2 [shape = 'u8[8192]{0}', space=vmem, size = 0x2000, scoped, tag = 'input window, operand 0, single buffered']
    #allocation3 [shape = 's32[1]{0}', space=sflag, size = 0x4, scoped, tag = 'scoped memory for tpu_custom_call.1']
    #allocation4 [shape = 's32[1]{0}', space=sflag, size = 0x4, scoped, tag = 'scoped memory for tpu_custom_call.1']
    #allocation5 [shape = 'u8[65536]{0}', space=vmem, size = 0x10000, scoped, tag = 'input window, operand 1, single buffered']
    #allocation6 [shape = 's32[1]{0}', space=sflag, size = 0x4, scoped, tag = 'scoped memory for tpu_custom_call.1']
    #allocation7 [shape = 'u8[131072]{0}', space=vmem, size = 0x20000, scoped, tag = 'input window, operand 2, single buffered']
    #allocation8 [shape = 'u8[65536]{0}', space=vmem, size = 0x10000, scoped, tag = 'input window, operand 3, single buffered']
    #allocation9 [shape = 's32[1]{0}', space=sflag, size = 0x4, scoped, tag = 'scoped memory for tpu_custom_call.1']
    #allocation10 [shape = 'u8[4096]{0}', space=vmem, size = 0x1000, scoped, tag = 'input window, operand 4, single buffered']
    #allocation11 [shape = 'u8[4096]{0}', space=vmem, size = 0x1000, scoped, tag = 'output window, operand 0, single buffered']
    %10 = vsyncpa [#allocation3], 0
    %11 = vsyncpa [#allocation6], 0
    %12 = vsyncpa [#allocation9], 0
    %13 = vsyncpa [#allocation4], 0
    // Predicated region
    $region2: #{tpu_custom_call.1} parent=1 // pred_check
      _
    $region3: #{tpu_custom_call.1} parent=1 // pred_check_branch
      %15 = sbr.rel (0) target = $region5
    $region4: #{tpu_custom_call.1} parent=1 // pred_region
      %s17 = ssub.s32 256, 256
      %18 = vsyncadd [#allocation3], %s17
      %s20 = sshll.u32 [#allocation2], 4
      %s21 = int_to_ptr.vmem [resolvable:$true] %s20
      %23 = dma.hbm_to_vmem [thread:$0]  %s0, 256, %s21, [#allocation3]
    $region5: #{tpu_custom_call.1} parent=1 // pred_fallthru
      _
    // Predicated region
    $region6: #{tpu_custom_call.1} parent=1 // pred_check
      _
    $region7: #{tpu_custom_call.1} parent=1 // pred_check_branch
      %25 = sbr.rel (0) target = $region9
    $region8: #{tpu_custom_call.1} parent=1 // pred_region
      %s27 = ssub.s32 2048, 2048
      %28 = vsyncadd [#allocation6], %s27
      %s29 = sshll.u32 [#allocation5], 4
      %s30 = int_to_ptr.vmem [resolvable:$true] %s29
      %35 = dma.hbm_to_vmem [thread:$0]  %s1, 2048, %s30, [#allocation6], 64, 64, 4
    $region9: #{tpu_custom_call.1} parent=1 // pred_fallthru
      _
    // Predicated region
    $region10: #{tpu_custom_call.1} parent=1 // pred_check
      _
    $region11: #{tpu_custom_call.1} parent=1 // pred_check_branch
      %37 = sbr.rel (0) target = $region13
    $region12: #{tpu_custom_call.1} parent=1 // pred_region
      %s39 = ssub.s32 4096, 4096
      %40 = vsyncadd [#allocation6], %s39
      %s41 = sshll.u32 [#allocation7], 4
      %s42 = int_to_ptr.vmem [resolvable:$true] %s41
      %47 = dma.hbm_to_vmem [thread:$0]  %s2, 4096, %s42, [#allocation6], 64, 64, 4
    $region13: #{tpu_custom_call.1} parent=1 // pred_fallthru
      _
    // Predicated region
    $region14: #{tpu_custom_call.1} parent=1 // pred_check
      _
    $region15: #{tpu_custom_call.1} parent=1 // pred_check_branch
      %49 = sbr.rel (0) target = $region17
    $region16: #{tpu_custom_call.1} parent=1 // pred_region
      %s51 = ssub.s32 2048, 2048
      %52 = vsyncadd [#allocation9], %s51
      %s53 = sshll.u32 [#allocation8], 4
      %s54 = int_to_ptr.vmem [resolvable:$true] %s53
      %59 = dma.hbm_to_vmem [thread:$0]  %s3, 2048, %s54, [#allocation9], 128, 128, 8
    $region17: #{tpu_custom_call.1} parent=1 // pred_fallthru
      _
    // Predicated region
    $region18: #{tpu_custom_call.1} parent=1 // pred_check
      _
    $region19: #{tpu_custom_call.1} parent=1 // pred_check_branch
      %61 = sbr.rel (0) target = $region21
    $region20: #{tpu_custom_call.1} parent=1 // pred_region
      %s63 = ssub.s32 128, 128
      %64 = vsyncadd [#allocation9], %s63
      %s66 = sshll.u32 [#allocation10], 4
      %s67 = int_to_ptr.vmem [resolvable:$true] %s66
      %69 = dma.hbm_to_vmem [thread:$0]  %s4, 128, %s67, [#allocation9]
    $region21: #{tpu_custom_call.1} parent=1 // pred_fallthru
      _
    // Predicated region
    $region22: #{tpu_custom_call.1} parent=1 // pred_check
      _
    $region23: #{tpu_custom_call.1} parent=1 // pred_check_branch
      %71 = sbr.rel (0) target = $region25
    $region24: #{tpu_custom_call.1} parent=1 // pred_region
      %72 = dma.done [#allocation3], 256
    $region25: #{tpu_custom_call.1} parent=1 // pred_fallthru
      _
    // Predicated region
    $region26: #{tpu_custom_call.1} parent=1 // pred_check
      _
    $region27: #{tpu_custom_call.1} parent=1 // pred_check_branch
      %74 = sbr.rel (0) target = $region29
    $region28: #{tpu_custom_call.1} parent=1 // pred_region
      %75 = dma.done [#allocation6], 2048
    $region29: #{tpu_custom_call.1} parent=1 // pred_fallthru
      _
    // Predicated region
    $region30: #{tpu_custom_call.1} parent=1 // pred_check
      _
    $region31: #{tpu_custom_call.1} parent=1 // pred_check_branch
      %77 = sbr.rel (0) target = $region33
    $region32: #{tpu_custom_call.1} parent=1 // pred_region
      %78 = dma.done [#allocation6], 4096
    $region33: #{tpu_custom_call.1} parent=1 // pred_fallthru
      _
    // Predicated region
    $region34: #{tpu_custom_call.1} parent=1 // pred_check
      _
    $region35: #{tpu_custom_call.1} parent=1 // pred_check_branch
      %80 = sbr.rel (0) target = $region37
    $region36: #{tpu_custom_call.1} parent=1 // pred_region
      %81 = dma.done [#allocation9], 2048
    $region37: #{tpu_custom_call.1} parent=1 // pred_fallthru
      _
    // Predicated region
    $region38: #{tpu_custom_call.1} parent=1 // pred_check
      _
    $region39: #{tpu_custom_call.1} parent=1 // pred_check_branch
      %83 = sbr.rel (0) target = $region41
    $region40: #{tpu_custom_call.1} parent=1 // pred_region
      %84 = dma.done [#allocation9], 128
    $region41: #{tpu_custom_call.1} parent=1 // pred_fallthru
      _
    %v86 = vld [vmem:[#allocation2] sm:$0xff]
    %v87 = vld [vmem:[#allocation2 + $0x8] sm:$0xff]
    %v88 = vld [vmem:[#allocation5] sm:$0xf]
    %v89 = vld [vmem:[#allocation5 + $0x4] sm:$0xf]
    %v90 = vld [vmem:[#allocation5 + $0x8] sm:$0xf]
    %v91 = vld [vmem:[#allocation5 + $0xc] sm:$0xf]
    %v92 = vld [vmem:[#allocation5 + $0x10] sm:$0xf]
    %v93 = vld [vmem:[#allocation5 + $0x14] sm:$0xf]
    %v94 = vld [vmem:[#allocation5 + $0x18] sm:$0xf]
    %v95 = vld [vmem:[#allocation5 + $0x1c] sm:$0xf]
    %v96 = vld [vmem:[#allocation5 + $0x20] sm:$0xf]
    %v97 = vld [vmem:[#allocation5 + $0x24] sm:$0xf]
    %v98 = vld [vmem:[#allocation5 + $0x28] sm:$0xf]
    %v99 = vld [vmem:[#allocation5 + $0x2c] sm:$0xf]
    %v100 = vld [vmem:[#allocation5 + $0x30] sm:$0xf]
    %v101 = vld [vmem:[#allocation5 + $0x34] sm:$0xf]
    %v102 = vld [vmem:[#allocation5 + $0x38] sm:$0xf]
    %v103 = vld [vmem:[#allocation5 + $0x3c] sm:$0xf]
    %v104 = vld [vmem:[#allocation5 + $0x40] sm:$0xf]
    %v105 = vld [vmem:[#allocation5 + $0x44] sm:$0xf]
    %v106 = vld [vmem:[#allocation5 + $0x48] sm:$0xf]
    %v107 = vld [vmem:[#allocation5 + $0x4c] sm:$0xf]
    %v108 = vld [vmem:[#allocation5 + $0x50] sm:$0xf]
    %v109 = vld [vmem:[#allocation5 + $0x54] sm:$0xf]
    %v110 = vld [vmem:[#allocation5 + $0x58] sm:$0xf]
    %v111 = vld [vmem:[#allocation5 + $0x5c] sm:$0xf]
    %v112 = vld [vmem:[#allocation5 + $0x60] sm:$0xf]
    %v113 = vld [vmem:[#allocation5 + $0x64] sm:$0xf]
    %v114 = vld [vmem:[#allocation5 + $0x68] sm:$0xf]
    %v115 = vld [vmem:[#allocation5 + $0x6c] sm:$0xf]
    %v116 = vld [vmem:[#allocation5 + $0x70] sm:$0xf]
    %v117 = vld [vmem:[#allocation5 + $0x74] sm:$0xf]
    %v118 = vld [vmem:[#allocation5 + $0x78] sm:$0xf]
    %v119 = vld [vmem:[#allocation5 + $0x7c] sm:$0xf]
    %v120 = vpack.c.bf16 %v86, %v86
    %v121 = vpack.c.bf16 %v87, %v87
    %v122 = vld [vmem:[#allocation10] sm:$0x1]
    %v123 = vlaneseq
    %v124 = vshrl.u32 %v123, 7
    %v125 = vsub.s32 0, %v124
    %v126 = vrot.slane %v122, %v125
    %v159 = vunpack.c.l.b16 %v88
    %v160 = vunpack.c.l.b16 %v89
    %v161 = vunpack.c.l.b16 %v90
    %v162 = vunpack.c.l.b16 %v91
    %v163 = vunpack.c.l.b16 %v92
    %v164 = vunpack.c.l.b16 %v93
    %v165 = vunpack.c.l.b16 %v94
    %v166 = vunpack.c.l.b16 %v95
    %v167 = vunpack.c.l.b16 %v96
    %v168 = vunpack.c.l.b16 %v97
    %v169 = vunpack.c.l.b16 %v98
    %v170 = vunpack.c.l.b16 %v99
    %v171 = vunpack.c.l.b16 %v100
    %v172 = vunpack.c.l.b16 %v101
    %v173 = vunpack.c.l.b16 %v102
    %v174 = vunpack.c.l.b16 %v103
    %v175 = vunpack.c.l.b16 %v104
    %v176 = vunpack.c.l.b16 %v105
    %v177 = vunpack.c.l.b16 %v106
    %v178 = vunpack.c.l.b16 %v107
    %v179 = vunpack.c.l.b16 %v108
    %v180 = vunpack.c.l.b16 %v109
    %v181 = vunpack.c.l.b16 %v110
    %v182 = vunpack.c.l.b16 %v111
    %v183 = vunpack.c.l.b16 %v112
    %v184 = vunpack.c.l.b16 %v113
    %v185 = vunpack.c.l.b16 %v114
    %v186 = vunpack.c.l.b16 %v115
    %v187 = vunpack.c.l.b16 %v116
    %v188 = vunpack.c.l.b16 %v117
    %v189 = vunpack.c.l.b16 %v118
    %v190 = vunpack.c.l.b16 %v119
    %v191 = vpack.c.b16 %v160, %v159
    %v192 = vpack.c.b16 %v162, %v161
    %v193 = vpack.c.b16 %v164, %v163
    %v194 = vpack.c.b16 %v166, %v165
    %v195 = vpack.c.b16 %v168, %v167
    %v196 = vpack.c.b16 %v170, %v169
    %v197 = vpack.c.b16 %v172, %v171
    %v198 = vpack.c.b16 %v174, %v173
    %v199 = vpack.c.b16 %v176, %v175
    %v200 = vpack.c.b16 %v178, %v177
    %v201 = vpack.c.b16 %v180, %v179
    %v202 = vpack.c.b16 %v182, %v181
    %v203 = vpack.c.b16 %v184, %v183
    %v204 = vpack.c.b16 %v186, %v185
    %v205 = vpack.c.b16 %v188, %v187
    %v206 = vpack.c.b16 %v190, %v189
    %223 = vmatprep.subr.bf16.mxu0 0
    %224 = vmatpush1.bf16.msra.mxu0 %v198
    %225 = vmatprep.subr.bf16.mxu0 0
    %226 = vmatpush1.bf16.msra.mxu0 %v197
    %227 = vmatprep.subr.bf16.mxu0 0
    %228 = vmatpush1.bf16.msra.mxu0 %v196
    %229 = vmatprep.subr.bf16.mxu0 0
    %230 = vmatpush1.bf16.msra.mxu0 %v195
    %231 = vmatprep.subr.bf16.mxu0 0
    %232 = vmatpush1.bf16.msra.mxu0 %v194
    %233 = vmatprep.subr.bf16.mxu0 0
    %234 = vmatpush1.bf16.msra.mxu0 %v193
    %235 = vmatprep.subr.bf16.mxu0 0
    %236 = vmatpush1.bf16.msra.mxu0 %v192
    %237 = vmatprep.subr.bf16.mxu0 0
    %238 = vmatpush1.bf16.msra.mxu0 %v191
    %239 = vmatprep.subr.bf16.mxu0 0
    %240 = vmatpush2.bf16.msra.mxu0 %v206
    %241 = vmatprep.subr.bf16.mxu0 0
    %242 = vmatpush2.bf16.msra.mxu0 %v205
    %243 = vmatprep.subr.bf16.mxu0 0
    %244 = vmatpush2.bf16.msra.mxu0 %v204
    %245 = vmatprep.subr.bf16.mxu0 0
    %246 = vmatpush2.bf16.msra.mxu0 %v203
    %247 = vmatprep.subr.bf16.mxu0 0
    %248 = vmatpush2.bf16.msra.mxu0 %v202
    %249 = vmatprep.subr.bf16.mxu0 0
    %250 = vmatpush2.bf16.msra.mxu0 %v201
    %251 = vmatprep.subr.bf16.mxu0 0
    %252 = vmatpush2.bf16.msra.mxu0 %v200
    %253 = vmatprep.subr.bf16.mxu0 0
    %254 = vmatpush2.bf16.msra.mxu0 %v199
    %255 = vmatprep.mubr.bf16.mxu0 %v121
    %256 = vmatmul.mubr.bf16.gmra.mxu0 %v120
    %v257 = vpop.f32.mrf.mxu0
    %v258 = vadd.f32 %v126, %v257
    %v259 = vpop.f32.mrf.mxu0
    %v260 = vpop.f32.mrf.mxu0
    %v261 = vpop.f32.mrf.mxu0
    %262 = vdwg.mxu0
    %v263 = vmax.f32 %v258, 0.0
    %v264 = vld [vmem:[#allocation8] sm:$0xff]
    %v265 = vld [vmem:[#allocation8 + $0x8] sm:$0xff]
    %v266 = vld [vmem:[#allocation8 + $0x10] sm:$0xff]
    %v267 = vld [vmem:[#allocation8 + $0x18] sm:$0xff]
    %v268 = vld [vmem:[#allocation8 + $0x20] sm:$0xff]
    %v269 = vld [vmem:[#allocation8 + $0x28] sm:$0xff]
    %v270 = vld [vmem:[#allocation8 + $0x30] sm:$0xff]
    %v271 = vld [vmem:[#allocation8 + $0x38] sm:$0xff]
    %v272 = vld [vmem:[#allocation8 + $0x40] sm:$0xff]
    %v273 = vld [vmem:[#allocation8 + $0x48] sm:$0xff]
    %v274 = vld [vmem:[#allocation8 + $0x50] sm:$0xff]
    %v275 = vld [vmem:[#allocation8 + $0x58] sm:$0xff]
    %v276 = vld [vmem:[#allocation8 + $0x60] sm:$0xff]
    %v277 = vld [vmem:[#allocation8 + $0x68] sm:$0xff]
    %v278 = vld [vmem:[#allocation8 + $0x70] sm:$0xff]
    %v279 = vld [vmem:[#allocation8 + $0x78] sm:$0xff]
    %v280 = vpack.c.bf16 %v263, %v263
    %v297 = vunpack.c.l.b16 %v264
    %v298 = vunpack.c.h.b16 %v264
    %v299 = vunpack.c.l.b16 %v265
    %v300 = vunpack.c.h.b16 %v265
    %v301 = vunpack.c.l.b16 %v266
    %v302 = vunpack.c.h.b16 %v266
    %v303 = vunpack.c.l.b16 %v267
    %v304 = vunpack.c.h.b16 %v267
    %v305 = vunpack.c.l.b16 %v268
    %v306 = vunpack.c.h.b16 %v268
    %v307 = vunpack.c.l.b16 %v269
    %v308 = vunpack.c.h.b16 %v269
    %v309 = vunpack.c.l.b16 %v270
    %v310 = vunpack.c.h.b16 %v270
    %v311 = vunpack.c.l.b16 %v271
    %v312 = vunpack.c.h.b16 %v271
    %v313 = vunpack.c.l.b16 %v272
    %v314 = vunpack.c.h.b16 %v272
    %v315 = vunpack.c.l.b16 %v273
    %v316 = vunpack.c.h.b16 %v273
    %v317 = vunpack.c.l.b16 %v274
    %v318 = vunpack.c.h.b16 %v274
    %v319 = vunpack.c.l.b16 %v275
    %v320 = vunpack.c.h.b16 %v275
    %v321 = vunpack.c.l.b16 %v276
    %v322 = vunpack.c.h.b16 %v276
    %v323 = vunpack.c.l.b16 %v277
    %v324 = vunpack.c.h.b16 %v277
    %v325 = vunpack.c.l.b16 %v278
    %v326 = vunpack.c.h.b16 %v278
    %v327 = vunpack.c.l.b16 %v279
    %v328 = vunpack.c.h.b16 %v279
    %v329 = vpack.c.b16 %v299, %v297
    %v330 = vpack.c.b16 %v300, %v298
    %v331 = vpack.c.b16 %v303, %v301
    %v332 = vpack.c.b16 %v304, %v302
    %v333 = vpack.c.b16 %v307, %v305
    %v334 = vpack.c.b16 %v308, %v306
    %v335 = vpack.c.b16 %v311, %v309
    %v336 = vpack.c.b16 %v312, %v310
    %v337 = vpack.c.b16 %v315, %v313
    %v338 = vpack.c.b16 %v316, %v314
    %v339 = vpack.c.b16 %v319, %v317
    %v340 = vpack.c.b16 %v320, %v318
    %v341 = vpack.c.b16 %v323, %v321
    %v342 = vpack.c.b16 %v324, %v322
    %v343 = vpack.c.b16 %v327, %v325
    %v344 = vpack.c.b16 %v328, %v326
    %361 = vmatprep.subr.bf16.mxu0 %v344
    %362 = vmatpush1.bf16.msra.mxu0 %v343
    %363 = vmatprep.subr.bf16.mxu0 %v342
    %364 = vmatpush1.bf16.msra.mxu0 %v341
    %365 = vmatprep.subr.bf16.mxu0 %v340
    %366 = vmatpush1.bf16.msra.mxu0 %v339
    %367 = vmatprep.subr.bf16.mxu0 %v338
    %368 = vmatpush1.bf16.msra.mxu0 %v337
    %369 = vmatprep.subr.bf16.mxu0 %v336
    %370 = vmatpush1.bf16.msra.mxu0 %v335
    %371 = vmatprep.subr.bf16.mxu0 %v334
    %372 = vmatpush1.bf16.msra.mxu0 %v333
    %373 = vmatprep.subr.bf16.mxu0 %v332
    %374 = vmatpush1.bf16.msra.mxu0 %v331
    %375 = vmatprep.subr.bf16.mxu0 %v330
    %376 = vmatpush1.bf16.msra.mxu0 %v329
    %377 = vmatprep.subr.bf16.mxu0 0
    %378 = vmatpush2.bf16.msra.mxu0 0
    %379 = vmatprep.subr.bf16.mxu0 0
    %380 = vmatpush2.bf16.msra.mxu0 0
    %381 = vmatprep.subr.bf16.mxu0 0
    %382 = vmatpush2.bf16.msra.mxu0 0
    %383 = vmatprep.subr.bf16.mxu0 0
    %384 = vmatpush2.bf16.msra.mxu0 0
    %385 = vmatprep.subr.bf16.mxu0 0
    %386 = vmatpush2.bf16.msra.mxu0 0
    %387 = vmatprep.subr.bf16.mxu0 0
    %388 = vmatpush2.bf16.msra.mxu0 0
    %389 = vmatprep.subr.bf16.mxu0 0
    %390 = vmatpush2.bf16.msra.mxu0 0
    %391 = vmatprep.subr.bf16.mxu0 0
    %392 = vmatpush2.bf16.msra.mxu0 0
    %393 = vmatprep.mubr.bf16.mxu0 0
    %394 = vmatmul.mubr.bf16.gmra.mxu0 %v280
    %v395 = vpop.f32.mrf.mxu0
    %v396 = vadd.f32 0.0, %v395
    %v397 = vpop.f32.mrf.mxu0
    %v398 = vadd.f32 0.0, %v397
    %v399 = vpop.f32.mrf.mxu0
    %v400 = vpop.f32.mrf.mxu0
    %401 = vdwg.mxu0
    %v402 = vld [vmem:[#allocation10 + $0x1] sm:$0x1]
    %v403 = vlaneseq
    %v404 = vshrl.u32 %v403, 7
    %v405 = vsub.s32 0, %v404
    %v406 = vrot.slane %v402, %v405
    %v407 = vadd.f32 %v396, %v406
    %v408 = vmax.f32 %v407, 0.0
    %v409 = vld [vmem:[#allocation10 + $0x2] sm:$0x1]
    %v410 = vlaneseq
    %v411 = vshrl.u32 %v410, 7
    %v412 = vsub.s32 0, %v411
    %v413 = vrot.slane %v409, %v412
    %v414 = vadd.f32 %v398, %v413
    %v415 = vld [vmem:[#allocation7] sm:$0xf]
    %v416 = vld [vmem:[#allocation7 + $0x4] sm:$0xf]
    %v417 = vld [vmem:[#allocation7 + $0x8] sm:$0xf]
    %v418 = vld [vmem:[#allocation7 + $0xc] sm:$0xf]
    %v419 = vld [vmem:[#allocation7 + $0x10] sm:$0xf]
    %v420 = vld [vmem:[#allocation7 + $0x14] sm:$0xf]
    %v421 = vld [vmem:[#allocation7 + $0x18] sm:$0xf]
    %v422 = vld [vmem:[#allocation7 + $0x1c] sm:$0xf]
    %v423 = vld [vmem:[#allocation7 + $0x20] sm:$0xf]
    %v424 = vld [vmem:[#allocation7 + $0x24] sm:$0xf]
    %v425 = vld [vmem:[#allocation7 + $0x28] sm:$0xf]
    %v426 = vld [vmem:[#allocation7 + $0x2c] sm:$0xf]
    %v427 = vld [vmem:[#allocation7 + $0x30] sm:$0xf]
    %v428 = vld [vmem:[#allocation7 + $0x34] sm:$0xf]
    %v429 = vld [vmem:[#allocation7 + $0x38] sm:$0xf]
    %v430 = vld [vmem:[#allocation7 + $0x3c] sm:$0xf]
    %v431 = vpack.c.bf16 %v408, %v408
    %v432 = vld [vmem:[#allocation10 + $0x3] sm:$0x1]
    %v433 = vlaneseq
    %v434 = vshrl.u32 %v433, 7
    %v435 = vsub.s32 0, %v434
    %v436 = vrot.slane %v432, %v435
    %v453 = vunpack.c.l.b16 %v415
    %v454 = vunpack.c.l.b16 %v416
    %v455 = vunpack.c.l.b16 %v417
    %v456 = vunpack.c.l.b16 %v418
    %v457 = vunpack.c.l.b16 %v419
    %v458 = vunpack.c.l.b16 %v420
    %v459 = vunpack.c.l.b16 %v421
    %v460 = vunpack.c.l.b16 %v422
    %v461 = vunpack.c.l.b16 %v423
    %v462 = vunpack.c.l.b16 %v424
    %v463 = vunpack.c.l.b16 %v425
    %v464 = vunpack.c.l.b16 %v426
    %v465 = vunpack.c.l.b16 %v427
    %v466 = vunpack.c.l.b16 %v428
    %v467 = vunpack.c.l.b16 %v429
    %v468 = vunpack.c.l.b16 %v430
    %v469 = vpack.c.b16 %v454, %v453
    %v470 = vpack.c.b16 %v456, %v455
    %v471 = vpack.c.b16 %v458, %v457
    %v472 = vpack.c.b16 %v460, %v459
    %v473 = vpack.c.b16 %v462, %v461
    %v474 = vpack.c.b16 %v464, %v463
    %v475 = vpack.c.b16 %v466, %v465
    %v476 = vpack.c.b16 %v468, %v467
    %485 = vmatprep.subr.bf16.mxu0 0
    %486 = vmatpush1.bf16.msra.mxu0 %v476
    %487 = vmatprep.subr.bf16.mxu0 0
    %488 = vmatpush1.bf16.msra.mxu0 %v475
    %489 = vmatprep.subr.bf16.mxu0 0
    %490 = vmatpush1.bf16.msra.mxu0 %v474
    %491 = vmatprep.subr.bf16.mxu0 0
    %492 = vmatpush1.bf16.msra.mxu0 %v473
    %493 = vmatprep.subr.bf16.mxu0 0
    %494 = vmatpush1.bf16.msra.mxu0 %v472
    %495 = vmatprep.subr.bf16.mxu0 0
    %496 = vmatpush1.bf16.msra.mxu0 %v471
    %497 = vmatprep.subr.bf16.mxu0 0
    %498 = vmatpush1.bf16.msra.mxu0 %v470
    %499 = vmatprep.subr.bf16.mxu0 0
    %500 = vmatpush1.bf16.msra.mxu0 %v469
    %501 = vmatprep.subr.bf16.mxu0 0
    %502 = vmatpush2.bf16.msra.mxu0 0
    %503 = vmatprep.subr.bf16.mxu0 0
    %504 = vmatpush2.bf16.msra.mxu0 0
    %505 = vmatprep.subr.bf16.mxu0 0
    %506 = vmatpush2.bf16.msra.mxu0 0
    %507 = vmatprep.subr.bf16.mxu0 0
    %508 = vmatpush2.bf16.msra.mxu0 0
    %509 = vmatprep.subr.bf16.mxu0 0
    %510 = vmatpush2.bf16.msra.mxu0 0
    %511 = vmatprep.subr.bf16.mxu0 0
    %512 = vmatpush2.bf16.msra.mxu0 0
    %513 = vmatprep.subr.bf16.mxu0 0
    %514 = vmatpush2.bf16.msra.mxu0 0
    %515 = vmatprep.subr.bf16.mxu0 0
    %516 = vmatpush2.bf16.msra.mxu0 0
    %517 = vmatprep.mubr.bf16.mxu0 0
    %518 = vmatmul.mubr.bf16.gmra.mxu0 %v431
    %v519 = vpop.f32.mrf.mxu0
    %v520 = vadd.f32 %v436, %v519
    %v521 = vpop.f32.mrf.mxu0
    %v522 = vpop.f32.mrf.mxu0
    %v523 = vpop.f32.mrf.mxu0
    %524 = vdwg.mxu0
    %v525 = vadd.f32 %v520, %v414
    %v526 = vmax.f32 %v525, 0.0
    %s527 = scalar_lea.vmem [#allocation7], 64
    %v528 = vld [vmem:[%s527] sm:$0xf]
    %v529 = vld [vmem:[%s527 + $0x4] sm:$0xf]
    %v530 = vld [vmem:[%s527 + $0x8] sm:$0xf]
    %v531 = vld [vmem:[%s527 + $0xc] sm:$0xf]
    %v532 = vld [vmem:[%s527 + $0x10] sm:$0xf]
    %v533 = vld [vmem:[%s527 + $0x14] sm:$0xf]
    %v534 = vld [vmem:[%s527 + $0x18] sm:$0xf]
    %v535 = vld [vmem:[%s527 + $0x1c] sm:$0xf]
    %v536 = vld [vmem:[%s527 + $0x20] sm:$0xf]
    %v537 = vld [vmem:[%s527 + $0x24] sm:$0xf]
    %v538 = vld [vmem:[%s527 + $0x28] sm:$0xf]
    %v539 = vld [vmem:[%s527 + $0x2c] sm:$0xf]
    %v540 = vld [vmem:[%s527 + $0x30] sm:$0xf]
    %v541 = vld [vmem:[%s527 + $0x34] sm:$0xf]
    %v542 = vld [vmem:[%s527 + $0x38] sm:$0xf]
    %v543 = vld [vmem:[%s527 + $0x3c] sm:$0xf]
    %v544 = vpack.c.bf16 %v526, %v526
    %v545 = vld [vmem:[#allocation10 + $0x4] sm:$0x1]
    %v546 = vlaneseq
    %v547 = vshrl.u32 %v546, 7
    %v548 = vsub.s32 0, %v547
    %v549 = vrot.slane %v545, %v548
    %v566 = vunpack.c.l.b16 %v528
    %v567 = vunpack.c.l.b16 %v529
    %v568 = vunpack.c.l.b16 %v530
    %v569 = vunpack.c.l.b16 %v531
    %v570 = vunpack.c.l.b16 %v532
    %v571 = vunpack.c.l.b16 %v533
    %v572 = vunpack.c.l.b16 %v534
    %v573 = vunpack.c.l.b16 %v535
    %v574 = vunpack.c.l.b16 %v536
    %v575 = vunpack.c.l.b16 %v537
    %v576 = vunpack.c.l.b16 %v538
    %v577 = vunpack.c.l.b16 %v539
    %v578 = vunpack.c.l.b16 %v540
    %v579 = vunpack.c.l.b16 %v541
    %v580 = vunpack.c.l.b16 %v542
    %v581 = vunpack.c.l.b16 %v543
    %v582 = vpack.c.b16 %v567, %v566
    %v583 = vpack.c.b16 %v569, %v568
    %v584 = vpack.c.b16 %v571, %v570
    %v585 = vpack.c.b16 %v573, %v572
    %v586 = vpack.c.b16 %v575, %v574
    %v587 = vpack.c.b16 %v577, %v576
    %v588 = vpack.c.b16 %v579, %v578
    %v589 = vpack.c.b16 %v581, %v580
    %598 = vmatprep.subr.bf16.mxu0 0
    %599 = vmatpush1.bf16.msra.mxu0 %v589
    %600 = vmatprep.subr.bf16.mxu0 0
    %601 = vmatpush1.bf16.msra.mxu0 %v588
    %602 = vmatprep.subr.bf16.mxu0 0
    %603 = vmatpush1.bf16.msra.mxu0 %v587
    %604 = vmatprep.subr.bf16.mxu0 0
    %605 = vmatpush1.bf16.msra.mxu0 %v586
    %606 = vmatprep.subr.bf16.mxu0 0
    %607 = vmatpush1.bf16.msra.mxu0 %v585
    %608 = vmatprep.subr.bf16.mxu0 0
    %609 = vmatpush1.bf16.msra.mxu0 %v584
    %610 = vmatprep.subr.bf16.mxu0 0
    %611 = vmatpush1.bf16.msra.mxu0 %v583
    %612 = vmatprep.subr.bf16.mxu0 0
    %613 = vmatpush1.bf16.msra.mxu0 %v582
    %614 = vmatprep.subr.bf16.mxu0 0
    %615 = vmatpush2.bf16.msra.mxu0 0
    %616 = vmatprep.subr.bf16.mxu0 0
    %617 = vmatpush2.bf16.msra.mxu0 0
    %618 = vmatprep.subr.bf16.mxu0 0
    %619 = vmatpush2.bf16.msra.mxu0 0
    %620 = vmatprep.subr.bf16.mxu0 0
    %621 = vmatpush2.bf16.msra.mxu0 0
    %622 = vmatprep.subr.bf16.mxu0 0
    %623 = vmatpush2.bf16.msra.mxu0 0
    %624 = vmatprep.subr.bf16.mxu0 0
    %625 = vmatpush2.bf16.msra.mxu0 0
    %626 = vmatprep.subr.bf16.mxu0 0
    %627 = vmatpush2.bf16.msra.mxu0 0
    %628 = vmatprep.subr.bf16.mxu0 0
    %629 = vmatpush2.bf16.msra.mxu0 0
    %630 = vmatprep.mubr.bf16.mxu0 0
    %631 = vmatmul.mubr.bf16.gmra.mxu0 %v544
    %v632 = vpop.f32.mrf.mxu0
    %v633 = vadd.f32 %v549, %v632
    %v634 = vpop.f32.mrf.mxu0
    %v635 = vpop.f32.mrf.mxu0
    %v636 = vpop.f32.mrf.mxu0
    %637 = vdwg.mxu0
    %v638 = vmax.f32 %v633, 0.0
    %s639 = scalar_lea.vmem [#allocation7], 128
    %v640 = vld [vmem:[%s639] sm:$0xf]
    %v641 = vld [vmem:[%s639 + $0x4] sm:$0xf]
    %v642 = vld [vmem:[%s639 + $0x8] sm:$0xf]
    %v643 = vld [vmem:[%s639 + $0xc] sm:$0xf]
    %v644 = vld [vmem:[%s639 + $0x10] sm:$0xf]
    %v645 = vld [vmem:[%s639 + $0x14] sm:$0xf]
    %v646 = vld [vmem:[%s639 + $0x18] sm:$0xf]
    %v647 = vld [vmem:[%s639 + $0x1c] sm:$0xf]
    %v648 = vld [vmem:[%s639 + $0x20] sm:$0xf]
    %v649 = vld [vmem:[%s639 + $0x24] sm:$0xf]
    %v650 = vld [vmem:[%s639 + $0x28] sm:$0xf]
    %v651 = vld [vmem:[%s639 + $0x2c] sm:$0xf]
    %v652 = vld [vmem:[%s639 + $0x30] sm:$0xf]
    %v653 = vld [vmem:[%s639 + $0x34] sm:$0xf]
    %v654 = vld [vmem:[%s639 + $0x38] sm:$0xf]
    %v655 = vld [vmem:[%s639 + $0x3c] sm:$0xf]
    %v656 = vpack.c.bf16 %v638, %v638
    %v657 = vld [vmem:[#allocation10 + $0x5] sm:$0x1]
    %v658 = vlaneseq
    %v659 = vshrl.u32 %v658, 7
    %v660 = vsub.s32 0, %v659
    %v661 = vrot.slane %v657, %v660
    %v678 = vunpack.c.l.b16 %v640
    %v679 = vunpack.c.l.b16 %v641
    %v680 = vunpack.c.l.b16 %v642
    %v681 = vunpack.c.l.b16 %v643
    %v682 = vunpack.c.l.b16 %v644
    %v683 = vunpack.c.l.b16 %v645
    %v684 = vunpack.c.l.b16 %v646
    %v685 = vunpack.c.l.b16 %v647
    %v686 = vunpack.c.l.b16 %v648
    %v687 = vunpack.c.l.b16 %v649
    %v688 = vunpack.c.l.b16 %v650
    %v689 = vunpack.c.l.b16 %v651
    %v690 = vunpack.c.l.b16 %v652
    %v691 = vunpack.c.l.b16 %v653
    %v692 = vunpack.c.l.b16 %v654
    %v693 = vunpack.c.l.b16 %v655
    %v694 = vpack.c.b16 %v679, %v678
    %v695 = vpack.c.b16 %v681, %v680
    %v696 = vpack.c.b16 %v683, %v682
    %v697 = vpack.c.b16 %v685, %v684
    %v698 = vpack.c.b16 %v687, %v686
    %v699 = vpack.c.b16 %v689, %v688
    %v700 = vpack.c.b16 %v691, %v690
    %v701 = vpack.c.b16 %v693, %v692
    %710 = vmatprep.subr.bf16.mxu0 0
    %711 = vmatpush1.bf16.msra.mxu0 %v701
    %712 = vmatprep.subr.bf16.mxu0 0
    %713 = vmatpush1.bf16.msra.mxu0 %v700
    %714 = vmatprep.subr.bf16.mxu0 0
    %715 = vmatpush1.bf16.msra.mxu0 %v699
    %716 = vmatprep.subr.bf16.mxu0 0
    %717 = vmatpush1.bf16.msra.mxu0 %v698
    %718 = vmatprep.subr.bf16.mxu0 0
    %719 = vmatpush1.bf16.msra.mxu0 %v697
    %720 = vmatprep.subr.bf16.mxu0 0
    %721 = vmatpush1.bf16.msra.mxu0 %v696
    %722 = vmatprep.subr.bf16.mxu0 0
    %723 = vmatpush1.bf16.msra.mxu0 %v695
    %724 = vmatprep.subr.bf16.mxu0 0
    %725 = vmatpush1.bf16.msra.mxu0 %v694
    %726 = vmatprep.subr.bf16.mxu0 0
    %727 = vmatpush2.bf16.msra.mxu0 0
    %728 = vmatprep.subr.bf16.mxu0 0
    %729 = vmatpush2.bf16.msra.mxu0 0
    %730 = vmatprep.subr.bf16.mxu0 0
    %731 = vmatpush2.bf16.msra.mxu0 0
    %732 = vmatprep.subr.bf16.mxu0 0
    %733 = vmatpush2.bf16.msra.mxu0 0
    %734 = vmatprep.subr.bf16.mxu0 0
    %735 = vmatpush2.bf16.msra.mxu0 0
    %736 = vmatprep.subr.bf16.mxu0 0
    %737 = vmatpush2.bf16.msra.mxu0 0
    %738 = vmatprep.subr.bf16.mxu0 0
    %739 = vmatpush2.bf16.msra.mxu0 0
    %740 = vmatprep.subr.bf16.mxu0 0
    %741 = vmatpush2.bf16.msra.mxu0 0
    %742 = vmatprep.mubr.bf16.mxu0 0
    %743 = vmatmul.mubr.bf16.gmra.mxu0 %v656
    %v744 = vpop.f32.mrf.mxu0
    %v745 = vadd.f32 %v661, %v744
    %v746 = vpop.f32.mrf.mxu0
    %v747 = vpop.f32.mrf.mxu0
    %v748 = vpop.f32.mrf.mxu0
    %749 = vdwg.mxu0
    %v750 = vadd.f32 %v745, %v526
    %v751 = vmax.f32 %v750, 0.0
    %s752 = scalar_lea.vmem [#allocation7], 192
    %v753 = vld [vmem:[%s752] sm:$0xf]
    %v754 = vld [vmem:[%s752 + $0x4] sm:$0xf]
    %v755 = vld [vmem:[%s752 + $0x8] sm:$0xf]
    %v756 = vld [vmem:[%s752 + $0xc] sm:$0xf]
    %v757 = vld [vmem:[%s752 + $0x10] sm:$0xf]
    %v758 = vld [vmem:[%s752 + $0x14] sm:$0xf]
    %v759 = vld [vmem:[%s752 + $0x18] sm:$0xf]
    %v760 = vld [vmem:[%s752 + $0x1c] sm:$0xf]
    %v761 = vld [vmem:[%s752 + $0x20] sm:$0xf]
    %v762 = vld [vmem:[%s752 + $0x24] sm:$0xf]
    %v763 = vld [vmem:[%s752 + $0x28] sm:$0xf]
    %v764 = vld [vmem:[%s752 + $0x2c] sm:$0xf]
    %v765 = vld [vmem:[%s752 + $0x30] sm:$0xf]
    %v766 = vld [vmem:[%s752 + $0x34] sm:$0xf]
    %v767 = vld [vmem:[%s752 + $0x38] sm:$0xf]
    %v768 = vld [vmem:[%s752 + $0x3c] sm:$0xf]
    %v769 = vpack.c.bf16 %v751, %v751
    %v770 = vld [vmem:[#allocation10 + $0x6] sm:$0x1]
    %v771 = vlaneseq
    %v772 = vshrl.u32 %v771, 7
    %v773 = vsub.s32 0, %v772
    %v774 = vrot.slane %v770, %v773
    %v791 = vunpack.c.l.b16 %v753
    %v792 = vunpack.c.l.b16 %v754
    %v793 = vunpack.c.l.b16 %v755
    %v794 = vunpack.c.l.b16 %v756
    %v795 = vunpack.c.l.b16 %v757
    %v796 = vunpack.c.l.b16 %v758
    %v797 = vunpack.c.l.b16 %v759
    %v798 = vunpack.c.l.b16 %v760
    %v799 = vunpack.c.l.b16 %v761
    %v800 = vunpack.c.l.b16 %v762
    %v801 = vunpack.c.l.b16 %v763
    %v802 = vunpack.c.l.b16 %v764
    %v803 = vunpack.c.l.b16 %v765
    %v804 = vunpack.c.l.b16 %v766
    %v805 = vunpack.c.l.b16 %v767
    %v806 = vunpack.c.l.b16 %v768
    %v807 = vpack.c.b16 %v792, %v791
    %v808 = vpack.c.b16 %v794, %v793
    %v809 = vpack.c.b16 %v796, %v795
    %v810 = vpack.c.b16 %v798, %v797
    %v811 = vpack.c.b16 %v800, %v799
    %v812 = vpack.c.b16 %v802, %v801
    %v813 = vpack.c.b16 %v804, %v803
    %v814 = vpack.c.b16 %v806, %v805
    %823 = vmatprep.subr.bf16.mxu0 0
    %824 = vmatpush1.bf16.msra.mxu0 %v814
    %825 = vmatprep.subr.bf16.mxu0 0
    %826 = vmatpush1.bf16.msra.mxu0 %v813
    %827 = vmatprep.subr.bf16.mxu0 0
    %828 = vmatpush1.bf16.msra.mxu0 %v812
    %829 = vmatprep.subr.bf16.mxu0 0
    %830 = vmatpush1.bf16.msra.mxu0 %v811
    %831 = vmatprep.subr.bf16.mxu0 0
    %832 = vmatpush1.bf16.msra.mxu0 %v810
    %833 = vmatprep.subr.bf16.mxu0 0
    %834 = vmatpush1.bf16.msra.mxu0 %v809
    %835 = vmatprep.subr.bf16.mxu0 0
    %836 = vmatpush1.bf16.msra.mxu0 %v808
    %837 = vmatprep.subr.bf16.mxu0 0
    %838 = vmatpush1.bf16.msra.mxu0 %v807
    %839 = vmatprep.subr.bf16.mxu0 0
    %840 = vmatpush2.bf16.msra.mxu0 0
    %841 = vmatprep.subr.bf16.mxu0 0
    %842 = vmatpush2.bf16.msra.mxu0 0
    %843 = vmatprep.subr.bf16.mxu0 0
    %844 = vmatpush2.bf16.msra.mxu0 0
    %845 = vmatprep.subr.bf16.mxu0 0
    %846 = vmatpush2.bf16.msra.mxu0 0
    %847 = vmatprep.subr.bf16.mxu0 0
    %848 = vmatpush2.bf16.msra.mxu0 0
    %849 = vmatprep.subr.bf16.mxu0 0
    %850 = vmatpush2.bf16.msra.mxu0 0
    %851 = vmatprep.subr.bf16.mxu0 0
    %852 = vmatpush2.bf16.msra.mxu0 0
    %853 = vmatprep.subr.bf16.mxu0 0
    %854 = vmatpush2.bf16.msra.mxu0 0
    %855 = vmatprep.mubr.bf16.mxu0 0
    %856 = vmatmul.mubr.bf16.gmra.mxu0 %v769
    %v857 = vpop.f32.mrf.mxu0
    %v858 = vadd.f32 %v774, %v857
    %v859 = vpop.f32.mrf.mxu0
    %v860 = vpop.f32.mrf.mxu0
    %v861 = vpop.f32.mrf.mxu0
    %862 = vdwg.mxu0
    %863 = vst [vmem:[#allocation11] sm:$0xff] %v858
    // Predicated region
    $region42: #{tpu_custom_call.1} parent=1 // pred_check
      _
    $region43: #{tpu_custom_call.1} parent=1 // pred_check_branch
      %865 = sbr.rel (0) target = $region45
    $region44: #{tpu_custom_call.1} parent=1 // pred_region
      %s867 = ssub.s32 128, 128
      %868 = vsyncadd [#allocation4], %s867
      %s870 = sshll.u32 [#allocation11], 4
      %s871 = int_to_ptr.vmem [resolvable:$true] %s870
      %873 = dma.vmem_to_hbm [thread:$0]  %s871, 128, %s5, [#allocation4]
    $region45: #{tpu_custom_call.1} parent=1 // pred_fallthru
      _
    // Predicated region
    $region46: #{tpu_custom_call.1} parent=1 // pred_check
      _
    $region47: #{tpu_custom_call.1} parent=1 // pred_check_branch
      %875 = sbr.rel (0) target = $region49
    $region48: #{tpu_custom_call.1} parent=1 // pred_region
      %876 = dma.done [#allocation4], 128
    $region49: #{tpu_custom_call.1} parent=1 // pred_fallthru
      _
    %877 = vsyncpa [#allocation3], 1
    %878 = vsyncpa [#allocation6], 1
    %879 = vsyncpa [#allocation9], 1
    %880 = vsyncpa [#allocation4], 1

</llo_original>
